<compile_context>
chip_gen: v7x
topology: tpu7x:2x2x1
jax: 0.10.0
libtpu: 0.0.40
codegen_flags: <defaults>
</compile_context>

<pallas_src>
import math

import jax
import jax.numpy as jnp
from jax import lax
from jax.experimental import pallas as pl
from jax.experimental.pallas import tpu as pltpu


def _encoder2_kernel(x_ref, w1_ref, b1_ref, w2_ref, b2t_ref, o_ref):
    # Hidden layer on the MXU, f32 operands / f32 accumulation:
    #   (TB, D) @ (D, 20) -> (TB, 20)
    h = jnp.dot(x_ref[...], w1_ref[...], preferred_element_type=jnp.float32)
    # Bias add + ReLU on the VPU in f32.
    h = jnp.maximum(h + b1_ref[...], jnp.float32(0.0))
    # Output layer computed TRANSPOSED so the store is lane-dense:
    # contract the hidden (20) dims of w2 (20, 2) and h (TB, 20) -> (2, TB).
    out_t = lax.dot_general(
        w2_ref[...], h,
        dimension_numbers=(((0,), (1,)), ((), ())),
        preferred_element_type=jnp.float32)
    # b2t is (2, 1): broadcast over the TB lane axis.
    o_ref[...] = out_t + b2t_ref[...]


def encoder2_forward(x, w1, b1, w2, b2, *, block_b=None):
    """Encoder_2 forward pass as a batch-tiled Pallas kernel.

    x  : (B, num_inputs) float32
    w1 : (num_inputs, 20) float32   (transposed PyTorch weight)
    b1 : (1, 20) float32
    w2 : (20, 2) float32            (transposed PyTorch weight)
    b2 : (1, 2) float32
    returns (B, 2) float32
    """
    B, D = x.shape
    H1 = w1.shape[1]
    H2 = w2.shape[1]

    x_f = x.astype(jnp.float32)
    w1_f = w1.astype(jnp.float32)
    w2_f = w2.astype(jnp.float32)
    b1_f = b1.reshape(1, H1).astype(jnp.float32)
    b2_t = b2.reshape(H2, 1).astype(jnp.float32)   # transposed bias for (H2, TB) tiles

    # --- batch tile size -------------------------------------------------
    row_bytes = D * 4                                   # one f32 row of x
    # Move at least ~2 MiB of x per grid step so the ~0.35 us per-step
    # overhead is well amortised.
    tb_target = max(1024, (2 * 1024 * 1024) // row_bytes)
    # Real VMEM footprint per buffer set (double-buffered by BlockSpec):
    #   x tile:  TB * D * 4 bytes
    #   out tile (H2, TB): sublanes pad H2 -> 8, so 8 * TB * 4 bytes
    # Keep 2x of each under a 20 MiB budget (fits v7x's 32 MiB scoped VMEM
    # with headroom; v5e/v6e have 128 MiB so this is conservative there).
    vmem_budget = 20 * 1024 * 1024
    tb_vmem = max(128, vmem_budget // (2 * row_bytes + 2 * 8 * 4))
    # Keep >= ~8 grid steps when B is large so v7x's two TensorCores both get
    # work from the "parallel" batch axis (no-op cost on v5e/v6e).
    tb_cores = pl.cdiv(B, 8)

    TB = min(tb_target, tb_vmem, tb_cores)
    if block_b is not None:
        TB = min(TB, block_b)
    # Multiple of 128 -> lane-dense transposed store, clean vreg packing.
    TB = max(128, (TB // 128) * 128)
    if TB >= B:
        TB = B                                          # single full block
    grid = (pl.cdiv(B, TB),)                            # ragged tail handled by Pallas

    flops = 2 * B * (D * H1 + H1 * H2)
    bytes_accessed = 4 * (B * D                         # x (f32)
                          + D * H1 + H1 * H2            # W1, W2
                          + H1 + H2                     # biases
                          + B * H2)                     # output

    out_t = pl.pallas_call(
        _encoder2_kernel,
        out_shape=jax.ShapeDtypeStruct((H2, B), jnp.float32),
        grid=grid,
        in_specs=[
            pl.BlockSpec((TB, D), lambda i: (i, 0)),    # x tiles (pipelined)
            pl.BlockSpec((D, H1), lambda i: (0, 0)),    # W1 (resident)
            pl.BlockSpec((1, H1), lambda i: (0, 0)),    # b1 (resident)
            pl.BlockSpec((H1, H2), lambda i: (0, 0)),   # W2 (resident)
            pl.BlockSpec((H2, 1), lambda i: (0, 0)),    # b2^T (resident)
        ],
        out_specs=pl.BlockSpec((H2, TB), lambda i: (0, i)),  # lane-dense store
        compiler_params=pltpu.CompilerParams(
            dimension_semantics=("parallel",),
            vmem_limit_bytes=32 * 1024 * 1024),
        cost_estimate=pl.CostEstimate(
            flops=flops, transcendentals=0, bytes_accessed=bytes_accessed),
    )(x_f, w1_f, b1_f, w2_f, b2_t)

    # Tiny (2, B) -> (B, 2) transpose in the wrapper; negligible traffic.
    return out_t.T


def init_encoder2_params(num_inputs, key):
    """Deterministic parameter init matching PyTorch's init_weights:
    xavier_uniform_ on Linear weights, bias filled with 0.01."""
    k1, k2 = jax.random.split(key)

    def xavier_uniform(k, fan_in, fan_out):
        a = math.sqrt(6.0 / (fan_in + fan_out))
        # PyTorch weight is (out, in); sample in that shape then transpose so
        # the kernel uses (in, out).
        w = jax.random.uniform(k, (fan_out, fan_in), jnp.float32, -a, a)
        return w.T

    w1 = xavier_uniform(k1, num_inputs, 20)          # (num_inputs, 20)
    b1 = jnp.full((1, 20), 0.01, dtype=jnp.float32)
    w2 = xavier_uniform(k2, 20, 2)                   # (20, 2)
    b2 = jnp.full((1, 2), 0.01, dtype=jnp.float32)
    return w1, b1, w2, b2


def encoder2_reference(x, w1, b1, w2, b2):
    """Pure-JAX f32 reference (module semantics)."""
    h = jnp.maximum(x @ w1 + b1, 0.0)
    return h @ w2 + b2


if __name__ == "__main__":
    key = jax.random.PRNGKey(0)
    k_x, k_p, k_x2 = jax.random.split(key, 3)

    num_inputs = 32
    w1, b1, w2, b2 = init_encoder2_params(num_inputs, k_p)

    # Small single-block case.
    batch = 64
    x = jax.random.normal(k_x, (batch, num_inputs), dtype=jnp.float32)
    out = jax.block_until_ready(encoder2_forward(x, w1, b1, w2, b2))
    assert out.shape == (batch, 2), out.shape
    ref = encoder2_reference(x, w1, b1, w2, b2)
    assert jnp.allclose(out, ref, atol=2e-3, rtol=2e-3), \
        float(jnp.max(jnp.abs(out - ref)))

    # Multi-step grid with a ragged tail (no host-side padding of x).
    batch2 = 300
    x2 = jax.random.normal(k_x2, (batch2, num_inputs), dtype=jnp.float32)
    out2 = jax.block_until_ready(encoder2_forward(x2, w1, b1, w2, b2))
    assert out2.shape == (batch2, 2), out2.shape
    ref2 = encoder2_reference(x2, w1, b1, w2, b2)
    assert jnp.allclose(out2, ref2, atol=2e-3, rtol=2e-3), \
        float(jnp.max(jnp.abs(out2 - ref2)))

    print("KERNEL_OK")
</pallas_src>

<mosaic_0001>
module attributes {stable_mosaic.version = 11 : i64} {
  func.func @_encoder2_kernel(%arg0: i32, %arg1: memref<64x32xf32, #tpu.memory_space<vmem>>, %arg2: memref<32x20xf32, #tpu.memory_space<vmem>>, %arg3: memref<1x20xf32, #tpu.memory_space<vmem>>, %arg4: memref<20x2xf32, #tpu.memory_space<vmem>>, %arg5: memref<2x1xf32, #tpu.memory_space<vmem>>, %arg6: memref<2x64xf32, #tpu.memory_space<vmem>>) attributes {dimension_semantics = [#tpu.dimension_semantics<parallel>], iteration_bounds = array<i64: 1>, scalar_prefetch = 0 : i64, scratch_operands = 0 : i64, tpu.core_type = #tpu.core_type<tc>, window_params = [{transform_indices = @transform_0, window_bounds = array<i64: 64, 32>}, {pipeline_mode = #tpu.pipeline_mode<synchronous>, transform_indices = @transform_1, window_bounds = array<i64: 32, 20>}, {pipeline_mode = #tpu.pipeline_mode<synchronous>, transform_indices = @transform_2, window_bounds = array<i64: 1, 20>}, {pipeline_mode = #tpu.pipeline_mode<synchronous>, transform_indices = @transform_3, window_bounds = array<i64: 20, 2>}, {pipeline_mode = #tpu.pipeline_mode<synchronous>, transform_indices = @transform_4, window_bounds = array<i64: 2, 1>}, {transform_indices = @transform_5, window_bounds = array<i64: 2, 64>}]} {
    %c0 = arith.constant 0 : index
    %c0_0 = arith.constant 0 : index
    %0 = vector.load %arg1[%c0, %c0_0] : memref<64x32xf32, #tpu.memory_space<vmem>>, vector<64x32xf32>
    %c0_1 = arith.constant 0 : index
    %c0_2 = arith.constant 0 : index
    %1 = vector.load %arg2[%c0_1, %c0_2] : memref<32x20xf32, #tpu.memory_space<vmem>>, vector<32x20xf32>
    %cst = arith.constant dense<0.000000e+00> : vector<64x20xf32>
    %2 = tpu.matmul %0, %1, %cst {dimension_numbers = #tpu.dot_dimension_numbers<[1], [0], [0], [1], [0, 0, 1, 1], [], []>} : vector<64x32xf32>, vector<32x20xf32>, vector<64x20xf32> -> vector<64x20xf32>
    %c0_3 = arith.constant 0 : index
    %c0_4 = arith.constant 0 : index
    %3 = vector.load %arg3[%c0_3, %c0_4] : memref<1x20xf32, #tpu.memory_space<vmem>>, vector<1x20xf32>
    %4 = vector.broadcast %3 : vector<1x20xf32> to vector<64x20xf32>
    %5 = arith.addf %2, %4 : vector<64x20xf32>
    %cst_5 = arith.constant 0.000000e+00 : f32
    %6 = vector.broadcast %cst_5 : f32 to vector<64x20xf32>
    %7 = arith.maximumf %5, %6 : vector<64x20xf32>
    %c0_6 = arith.constant 0 : index
    %c0_7 = arith.constant 0 : index
    %8 = vector.load %arg4[%c0_6, %c0_7] : memref<20x2xf32, #tpu.memory_space<vmem>>, vector<20x2xf32>
    %cst_8 = arith.constant dense<0.000000e+00> : vector<2x64xf32>
    %9 = tpu.matmul %8, %7, %cst_8 {dimension_numbers = #tpu.dot_dimension_numbers<[0], [1], [1], [0], [0, 1, 1, 0], [], []>} : vector<20x2xf32>, vector<64x20xf32>, vector<2x64xf32> -> vector<2x64xf32>
    %c0_9 = arith.constant 0 : index
    %c0_10 = arith.constant 0 : index
    %10 = vector.load %arg5[%c0_9, %c0_10] : memref<2x1xf32, #tpu.memory_space<vmem>>, vector<2x1xf32>
    %11 = vector.broadcast %10 : vector<2x1xf32> to vector<2x64xf32>
    %12 = arith.addf %9, %11 : vector<2x64xf32>
    %c0_11 = arith.constant 0 : index
    %c0_12 = arith.constant 0 : index
    %13 = vector.load %arg6[%c0_11, %c0_12] : memref<2x64xf32, #tpu.memory_space<vmem>>, vector<2x64xf32>
    tpu.vector_store %arg6[%c0_11, %c0_12], %12 {strides = array<i32>} : memref<2x64xf32, #tpu.memory_space<vmem>>, vector<2x64xf32>,
    return
  }
  func.func @transform_0(%arg0: i32) -> (i32, i32) {
    %c0_i32 = arith.constant 0 : i32
    %c0_i32_0 = arith.constant 0 : i32
    return %arg0, %c0_i32 : i32, i32
  }
  func.func @transform_1(%arg0: i32) -> (i32, i32) {
    %c0_i32 = arith.constant 0 : i32
    %c0_i32_0 = arith.constant 0 : i32
    %c0_i32_1 = arith.constant 0 : i32
    return %c0_i32, %c0_i32_0 : i32, i32
  }
  func.func @transform_2(%arg0: i32) -> (i32, i32) {
    %c0_i32 = arith.constant 0 : i32
    %c0_i32_0 = arith.constant 0 : i32
    %c0_i32_1 = arith.constant 0 : i32
    return %c0_i32, %c0_i32_0 : i32, i32
  }
  func.func @transform_3(%arg0: i32) -> (i32, i32) {
    %c0_i32 = arith.constant 0 : i32
    %c0_i32_0 = arith.constant 0 : i32
    %c0_i32_1 = arith.constant 0 : i32
    return %c0_i32, %c0_i32_0 : i32, i32
  }
  func.func @transform_4(%arg0: i32) -> (i32, i32) {
    %c0_i32 = arith.constant 0 : i32
    %c0_i32_0 = arith.constant 0 : i32
    %c0_i32_1 = arith.constant 0 : i32
    return %c0_i32, %c0_i32_0 : i32, i32
  }
  func.func @transform_5(%arg0: i32) -> (i32, i32) {
    %c0_i32 = arith.constant 0 : i32
    %c0_i32_0 = arith.constant 0 : i32
    return %c0_i32, %arg0 : i32, i32
  }
}

</mosaic_0001>

<llo_original>
// kernel: tpu_custom_call.1
$region0: #{tpu_custom_call.1}
  #allocation0 [shape = 'u32[]', space=smem, size = 0x4, offset = 0x4, fixed_abs, tag = 'smem constant byte address 0x4 - core index']
  #allocation1 [shape = 'u32[144,128]{1,0:T(1,128)}', space=vmem, size = 0x12000, scoped, tag = 'internal scratch']
  %s0 = inlined_call_operand.vmem [shape: f32[64,32], index: 0, kind: input, shape index: {}]
  %s1 = inlined_call_operand.vmem [shape: f32[32,20], index: 1, kind: input, shape index: {}]
  %s2 = inlined_call_operand.vmem [shape: f32[1,20], index: 2, kind: input, shape index: {}]
  %s3 = inlined_call_operand.vmem [shape: f32[20,2], index: 3, kind: input, shape index: {}]
  %s4 = inlined_call_operand.vmem [shape: f32[2,1], index: 4, kind: input, shape index: {}]
  %s5 = inlined_call_operand.hbm [shape: f32[2,64], index: 5, kind: output, shape index: {}]
  %s6 = sld [smem:[#allocation0]]
  $region30: #{tpu_custom_call.1} parent=0
    _
  %s8 = ssub.s32 1, %s6
  %s9 = scalar_select 0, %s8, %s6
  $region1: #{tpu_custom_call.1} parent=0
    #allocation2 [shape = 'u8[1024]{0}', space=vmem, size = 0x400, scoped, tag = 'output window, operand 0, single buffered']
    #allocation3 [shape = 's32[1]{0}', space=sflag, size = 0x4, scoped, tag = 'scoped memory for tpu_custom_call.1']
    %10 = vsyncpa [#allocation3], 0
    // Predicated region
    $region2: #{tpu_custom_call.1} parent=1 // pred_check
      _
    $region3: #{tpu_custom_call.1} parent=1 // pred_check_branch
      %12 = sbr.rel (0) target = $region5
    $region4: #{tpu_custom_call.1} parent=1 // pred_region
      _
    $region5: #{tpu_custom_call.1} parent=1 // pred_fallthru
      _
    // Predicated region
    $region6: #{tpu_custom_call.1} parent=1 // pred_check
      _
    $region7: #{tpu_custom_call.1} parent=1 // pred_check_branch
      %14 = sbr.rel (0) target = $region9
    $region8: #{tpu_custom_call.1} parent=1 // pred_region
      _
    $region9: #{tpu_custom_call.1} parent=1 // pred_fallthru
      _
    // Predicated region
    $region10: #{tpu_custom_call.1} parent=1 // pred_check
      _
    $region11: #{tpu_custom_call.1} parent=1 // pred_check_branch
      %16 = sbr.rel (0) target = $region13
    $region12: #{tpu_custom_call.1} parent=1 // pred_region
      _
    $region13: #{tpu_custom_call.1} parent=1 // pred_fallthru
      _
    // Predicated region
    $region14: #{tpu_custom_call.1} parent=1 // pred_check
      _
    $region15: #{tpu_custom_call.1} parent=1 // pred_check_branch
      %18 = sbr.rel (0) target = $region17
    $region16: #{tpu_custom_call.1} parent=1 // pred_region
      _
    $region17: #{tpu_custom_call.1} parent=1 // pred_fallthru
      _
    // Predicated region
    $region18: #{tpu_custom_call.1} parent=1 // pred_check
      _
    $region19: #{tpu_custom_call.1} parent=1 // pred_check_branch
      %20 = sbr.rel (0) target = $region21
    $region20: #{tpu_custom_call.1} parent=1 // pred_region
      _
    $region21: #{tpu_custom_call.1} parent=1 // pred_fallthru
      _
    %v21 = vld [vmem:[%s0] sm:$0xff]
    %v22 = vld [vmem:[%s0 + $0x8] sm:$0xff]
    %v23 = vld [vmem:[%s0 + $0x10] sm:$0xff]
    %v24 = vld [vmem:[%s0 + $0x18] sm:$0xff]
    %v25 = vld [vmem:[%s0 + $0x20] sm:$0xff]
    %v26 = vld [vmem:[%s0 + $0x28] sm:$0xff]
    %v27 = vld [vmem:[%s0 + $0x30] sm:$0xff]
    %v28 = vld [vmem:[%s0 + $0x38] sm:$0xff]
    %v29 = vld [vmem:[%s1] sm:$0xff]
    %v30 = vld [vmem:[%s1 + $0x8] sm:$0xff]
    %v31 = vld [vmem:[%s1 + $0x10] sm:$0xff]
    %v32 = vld [vmem:[%s1 + $0x18] sm:$0xff]
    %v33 = vld [vmem:[%s2] sm:$0x1]
    %v35 = vlaneseq
    %v36 = vshrl.u32 %v35, 7
    %v37 = vsub.s32 0, %v36
    %v38 = vrot.slane %v33, %v37
    %vm40 = vcmask 261120
    %v42 = vsel %vm40, %v21, 0
    %v45 = vsel %vm40, %v22, 0
    %v48 = vsel %vm40, %v23, 0
    %v51 = vsel %vm40, %v24, 0
    %v54 = vsel %vm40, %v25, 0
    %v57 = vsel %vm40, %v26, 0
    %v60 = vsel %vm40, %v27, 0
    %v63 = vsel %vm40, %v28, 0
    %65 = vmatprep.subr.mxu0 0.0
    %66 = vmatpush1.msra.mxu0 %v29
    %67 = vmatprep.subr.mxu0 0.0
    %68 = vmatpush1.msra.mxu0 %v30
    %69 = vmatprep.subr.mxu0 0.0
    %70 = vmatpush1.msra.mxu0 %v31
    %71 = vmatprep.subr.mxu0 0.0
    %72 = vmatpush1.msra.mxu0 %v32
    %73 = vmatprep.subr.mxu0 0.0
    %74 = vmatpush1.msra.mxu0 0.0
    %75 = vmatprep.subr.mxu0 0.0
    %76 = vmatpush1.msra.mxu0 0.0
    %77 = vmatprep.subr.mxu0 0.0
    %78 = vmatpush1.msra.mxu0 0.0
    %79 = vmatprep.subr.mxu0 0.0
    %80 = vmatpush1.msra.mxu0 0.0
    %81 = vmatprep.subr.mxu0 0.0
    %82 = vmatpush1.msra.mxu0 0.0
    %83 = vmatprep.subr.mxu0 0.0
    %84 = vmatpush1.msra.mxu0 0.0
    %85 = vmatprep.subr.mxu0 0.0
    %86 = vmatpush1.msra.mxu0 0.0
    %87 = vmatprep.subr.mxu0 0.0
    %88 = vmatpush1.msra.mxu0 0.0
    %89 = vmatprep.subr.mxu0 0.0
    %90 = vmatpush1.msra.mxu0 0.0
    %91 = vmatprep.subr.mxu0 0.0
    %92 = vmatpush1.msra.mxu0 0.0
    %93 = vmatprep.subr.mxu0 0.0
    %94 = vmatpush1.msra.mxu0 0.0
    %95 = vmatprep.subr.mxu0 0.0
    %96 = vmatpush1.msra.mxu0 0.0
    %97 = vmatprep.subr.mxu0 0.0
    %98 = vmatpush1.msra.mxu0 0.0
    %99 = vmatprep.subr.mxu0 0.0
    %100 = vmatpush1.msra.mxu0 0.0
    %101 = vmatprep.subr.mxu0 0.0
    %102 = vmatpush1.msra.mxu0 0.0
    %103 = vmatprep.subr.mxu0 0.0
    %104 = vmatpush1.msra.mxu0 0.0
    %105 = vmatprep.subr.mxu0 0.0
    %106 = vmatpush1.msra.mxu0 0.0
    %107 = vmatprep.subr.mxu0 0.0
    %108 = vmatpush1.msra.mxu0 0.0
    %109 = vmatprep.subr.mxu0 0.0
    %110 = vmatpush1.msra.mxu0 0.0
    %111 = vmatprep.subr.mxu0 0.0
    %112 = vmatpush1.msra.mxu0 0.0
    %113 = vmatprep.subr.mxu0 0.0
    %114 = vmatpush1.msra.mxu0 0.0
    %115 = vmatprep.subr.mxu0 0.0
    %116 = vmatpush1.msra.mxu0 0.0
    %117 = vmatprep.subr.mxu0 0.0
    %118 = vmatpush1.msra.mxu0 0.0
    %119 = vmatprep.subr.mxu0 0.0
    %120 = vmatpush1.msra.mxu0 0.0
    %121 = vmatprep.subr.mxu0 0.0
    %122 = vmatpush1.msra.mxu0 0.0
    %123 = vmatprep.subr.mxu0 0.0
    %124 = vmatpush1.msra.mxu0 0.0
    %125 = vmatprep.subr.mxu0 0.0
    %126 = vmatpush1.msra.mxu0 0.0
    %127 = vmatprep.subr.mxu0 0.0
    %128 = vmatpush1.msra.mxu0 0.0
    %129 = vmatprep.mubr.f32.mxu0 0.0
    %130 = vmatmul.mubr.f32.gmra.mrb[0].mxu0 %v42
    %v131 = vpop.f32.mrb[0].mxu0
    %v132 = vadd.f32 %v38, %v131
    %v133 = vpop.f32.mrb[0].mxu0
    %134 = vmatprep.mubr.f32.mxu0 0.0
    %135 = vmatmul.mubr.f32.gmra.mrb[0].mxu0 %v45
    %v136 = vpop.f32.mrb[0].mxu0
    %v137 = vadd.f32 %v38, %v136
    %v138 = vpop.f32.mrb[0].mxu0
    %139 = vmatprep.mubr.f32.mxu0 0.0
    %140 = vmatmul.mubr.f32.gmra.mrb[0].mxu0 %v48
    %v141 = vpop.f32.mrb[0].mxu0
    %v142 = vadd.f32 %v38, %v141
    %v143 = vpop.f32.mrb[0].mxu0
    %144 = vmatprep.mubr.f32.mxu0 0.0
    %145 = vmatmul.mubr.f32.gmra.mrb[0].mxu0 %v51
    %v146 = vpop.f32.mrb[0].mxu0
    %v147 = vadd.f32 %v38, %v146
    %v148 = vpop.f32.mrb[0].mxu0
    %149 = vmatprep.mubr.f32.mxu0 0.0
    %150 = vmatmul.mubr.f32.gmra.mrb[0].mxu0 %v54
    %v151 = vpop.f32.mrb[0].mxu0
    %v152 = vadd.f32 %v38, %v151
    %v153 = vpop.f32.mrb[0].mxu0
    %154 = vmatprep.mubr.f32.mxu0 0.0
    %155 = vmatmul.mubr.f32.gmra.mrb[0].mxu0 %v57
    %v156 = vpop.f32.mrb[0].mxu0
    %v157 = vadd.f32 %v38, %v156
    %v158 = vpop.f32.mrb[0].mxu0
    %159 = vmatprep.mubr.f32.mxu0 0.0
    %160 = vmatmul.mubr.f32.gmra.mrb[0].mxu0 %v60
    %v161 = vpop.f32.mrb[0].mxu0
    %v162 = vadd.f32 %v38, %v161
    %v163 = vpop.f32.mrb[0].mxu0
    %164 = vmatprep.mubr.f32.mxu0 0.0
    %165 = vmatmul.mubr.f32.gmra.mrb[0].mxu0 %v63
    %v166 = vpop.f32.mrb[0].mxu0
    %v167 = vadd.f32 %v38, %v166
    %v168 = vpop.f32.mrb[0].mxu0
    %169 = vdwg.mxu0
    %v170 = vmax.f32 %v132, 0.0
    %v171 = vmax.f32 %v137, 0.0
    %v172 = vmax.f32 %v142, 0.0
    %v173 = vmax.f32 %v147, 0.0
    %v174 = vmax.f32 %v152, 0.0
    %v175 = vmax.f32 %v157, 0.0
    %v176 = vmax.f32 %v162, 0.0
    %v177 = vmax.f32 %v167, 0.0
    %v178 = vld [vmem:[%s3] sm:$0xff]
    %v179 = vld [vmem:[%s3 + $0x8] sm:$0xff]
    %v180 = vld [vmem:[%s3 + $0x10] sm:$0xf]
    %v181 = vld [vmem:[%s4] sm:$0x3]
    %183 = vset.pattern.permute.xlu0 0
    %184 = vperm.xlu0 %183, %v181
    %v185 = vpop.permute.xlu0 %184
    %187 = vxpose.xlu0.b32.start [1/16] %v178, 128
    %188 = vxpose.xlu0.b32.cont [2/16] %v179, 128
    %189 = vxpose.xlu0.b32.cont [3/16] %v180, 128
    %190 = vxpose.xlu0.b32.cont [4/16] 0.0, 128
    %191 = vxpose.xlu0.b32.cont [5/16] 0.0, 128
    %192 = vxpose.xlu0.b32.cont [6/16] 0.0, 128
    %193 = vxpose.xlu0.b32.cont [7/16] 0.0, 128
    %194 = vxpose.xlu0.b32.cont [8/16] 0.0, 128
    %195 = vxpose.xlu0.b32.cont [9/16] 0.0, 128
    %196 = vxpose.xlu0.b32.cont [10/16] 0.0, 128
    %197 = vxpose.xlu0.b32.cont [11/16] 0.0, 128
    %198 = vxpose.xlu0.b32.cont [12/16] 0.0, 128
    %199 = vxpose.xlu0.b32.cont [13/16] 0.0, 128
    %200 = vxpose.xlu0.b32.cont [14/16] 0.0, 128
    %201 = vxpose.xlu0.b32.cont [15/16] 0.0, 128
    %202 = vxpose.xlu0.b32.end [16/16] 0.0, 128
    %v203 = vpop.trf.xlu0
    %v204 = vpop.trf.xlu0
    %v205 = vpop.trf.xlu0
    %v206 = vpop.trf.xlu0
    %v207 = vpop.trf.xlu0
    %v208 = vpop.trf.xlu0
    %v209 = vpop.trf.xlu0
    %v210 = vpop.trf.xlu0
    %v211 = vpop.trf.xlu0
    %v212 = vpop.trf.xlu0
    %v213 = vpop.trf.xlu0
    %v214 = vpop.trf.xlu0
    %v215 = vpop.trf.xlu0
    %v216 = vpop.trf.xlu0
    %v217 = vpop.trf.xlu0
    %v218 = vpop.trf.xlu0
    %vm219 = vcmask 162816
    %v221 = vsel %vm219, %v203, 0
    %v224 = vsel %vm219, %v170, 0
    %v227 = vsel %vm219, %v171, 0
    %v230 = vsel %vm219, %v172, 0
    %v233 = vsel %vm219, %v173, 0
    %v236 = vsel %vm219, %v174, 0
    %v239 = vsel %vm219, %v175, 0
    %v242 = vsel %vm219, %v176, 0
    %v245 = vsel %vm219, %v177, 0
    %247 = vmatprep.subr.mxu0 0.0
    %248 = vmatpush1.xpose.msra.mxu0 %v224
    %249 = vmatprep.subr.mxu0 0.0
    %250 = vmatpush1.xpose.msra.mxu0 %v227
    %251 = vmatprep.subr.mxu0 0.0
    %252 = vmatpush1.xpose.msra.mxu0 %v230
    %253 = vmatprep.subr.mxu0 0.0
    %254 = vmatpush1.xpose.msra.mxu0 %v233
    %255 = vmatprep.subr.mxu0 0.0
    %256 = vmatpush1.xpose.msra.mxu0 %v236
    %257 = vmatprep.subr.mxu0 0.0
    %258 = vmatpush1.xpose.msra.mxu0 %v239
    %259 = vmatprep.subr.mxu0 0.0
    %260 = vmatpush1.xpose.msra.mxu0 %v242
    %261 = vmatprep.subr.mxu0 0.0
    %262 = vmatpush1.xpose.msra.mxu0 %v245
    %263 = vmatprep.subr.mxu0 0.0
    %264 = vmatpush1.xpose.msra.mxu0 0.0
    %265 = vmatprep.subr.mxu0 0.0
    %266 = vmatpush1.xpose.msra.mxu0 0.0
    %267 = vmatprep.subr.mxu0 0.0
    %268 = vmatpush1.xpose.msra.mxu0 0.0
    %269 = vmatprep.subr.mxu0 0.0
    %270 = vmatpush1.xpose.msra.mxu0 0.0
    %271 = vmatprep.subr.mxu0 0.0
    %272 = vmatpush1.xpose.msra.mxu0 0.0
    %273 = vmatprep.subr.mxu0 0.0
    %274 = vmatpush1.xpose.msra.mxu0 0.0
    %275 = vmatprep.subr.mxu0 0.0
    %276 = vmatpush1.xpose.msra.mxu0 0.0
    %277 = vmatprep.subr.mxu0 0.0
    %278 = vmatpush1.xpose.msra.mxu0 0.0
    %279 = vmatprep.subr.mxu0 0.0
    %280 = vmatpush1.xpose.msra.mxu0 0.0
    %281 = vmatprep.subr.mxu0 0.0
    %282 = vmatpush1.xpose.msra.mxu0 0.0
    %283 = vmatprep.subr.mxu0 0.0
    %284 = vmatpush1.xpose.msra.mxu0 0.0
    %285 = vmatprep.subr.mxu0 0.0
    %286 = vmatpush1.xpose.msra.mxu0 0.0
    %287 = vmatprep.subr.mxu0 0.0
    %288 = vmatpush1.xpose.msra.mxu0 0.0
    %289 = vmatprep.subr.mxu0 0.0
    %290 = vmatpush1.xpose.msra.mxu0 0.0
    %291 = vmatprep.subr.mxu0 0.0
    %292 = vmatpush1.xpose.msra.mxu0 0.0
    %293 = vmatprep.subr.mxu0 0.0
    %294 = vmatpush1.xpose.msra.mxu0 0.0
    %295 = vmatprep.subr.mxu0 0.0
    %296 = vmatpush1.xpose.msra.mxu0 0.0
    %297 = vmatprep.subr.mxu0 0.0
    %298 = vmatpush1.xpose.msra.mxu0 0.0
    %299 = vmatprep.subr.mxu0 0.0
    %300 = vmatpush1.xpose.msra.mxu0 0.0
    %301 = vmatprep.subr.mxu0 0.0
    %302 = vmatpush1.xpose.msra.mxu0 0.0
    %303 = vmatprep.subr.mxu0 0.0
    %304 = vmatpush1.xpose.msra.mxu0 0.0
    %305 = vmatprep.subr.mxu0 0.0
    %306 = vmatpush1.xpose.msra.mxu0 0.0
    %307 = vmatprep.subr.mxu0 0.0
    %308 = vmatpush1.xpose.msra.mxu0 0.0
    %309 = vmatprep.subr.mxu0 0.0
    %310 = vmatpush1.xpose.msra.mxu0 0.0
    %311 = vmatprep.mubr.f32.mxu0 0.0
    %312 = vmatmul.mubr.f32.gmra.mrb[0].mxu0 %v221
    %v313 = vpop.f32.mrb[0].mxu0
    %v314 = vadd.f32 %v185, %v313
    %v315 = vpop.f32.mrb[0].mxu0
    %316 = vdwg.mxu0
    %vm317 = vcmask 517120
    %318 = vst.msk [vmem:[#allocation2] sm:$0x3] %vm317, %v314
    // Predicated region
    $region22: #{tpu_custom_call.1} parent=1 // pred_check
      _
    $region23: #{tpu_custom_call.1} parent=1 // pred_check_branch
      %320 = sbr.rel (0) target = $region25
    $region24: #{tpu_custom_call.1} parent=1 // pred_region
      %s322 = ssub.s32 32, 32
      %323 = vsyncadd [#allocation3], %s322
      %s325 = sshll.u32 [#allocation2], 4
      %s326 = int_to_ptr.vmem [resolvable:$true] %s325
      %328 = dma.vmem_to_hbm [thread:$0]  %s326, 32, %s5, [#allocation3]
    $region25: #{tpu_custom_call.1} parent=1 // pred_fallthru
      _
    // Predicated region
    $region26: #{tpu_custom_call.1} parent=1 // pred_check
      _
    $region27: #{tpu_custom_call.1} parent=1 // pred_check_branch
      %330 = sbr.rel (0) target = $region29
    $region28: #{tpu_custom_call.1} parent=1 // pred_region
      %331 = dma.done [#allocation3], 32
    $region29: #{tpu_custom_call.1} parent=1 // pred_fallthru
      _
    %332 = vsyncpa [#allocation3], 1

</llo_original>
